<compile_context>
chip_gen: v5e
topology: v5e:2x2
jax: 0.10.0
libtpu: 0.0.40
codegen_flags: <defaults>
</compile_context>

<pallas_src>
import functools

import jax
import jax.numpy as jnp
from jax.experimental import pallas as pl
from jax.experimental.pallas import tpu as pltpu

LEAKY_SLOPE = 0.01  # torch.nn.LeakyReLU default negative_slope
LANE = 128
SUBLANE = 8


def _round_up(x, m):
    return (x + m - 1) // m * m


def _cdiv(a, b):
    return (a + b - 1) // b


def _choose_batch_tiling(batch, max_tile_b):
    """Pick (tile_b, b_pad): tile_b multiple of 8, >=2 tiles when possible (v7x)."""
    b_aligned = _round_up(max(batch, 1), SUBLANE)
    min_tiles = 2 if b_aligned >= 2 * SUBLANE else 1   # use both TCs on v7x
    num_tiles = max(_cdiv(b_aligned, max_tile_b), min_tiles)
    tile_b = _round_up(_cdiv(b_aligned, num_tiles), SUBLANE)
    b_pad = _round_up(b_aligned, tile_b)
    return tile_b, b_pad


# ----------------------------------------------------------------------------
# Kernel: the whole MLP (every Linear + LeakyReLU) fused into one pallas_call.
# refs = (r_ref, x_ref, w0_r, w0_x, b0, [w_l, b_l for l=1..L-1], out_ref)
# ----------------------------------------------------------------------------
def _v_net_kernel(*refs, num_layers, activate_final, slope):
    r_ref, x_ref = refs[0], refs[1]
    o_ref = refs[-1]
    pr = refs[2:-1]           # parameters, unrolled at trace time

    def leaky(y):
        return jnp.where(y >= 0, y, slope * y)

    # Layer 0: concat(r, x) @ W0  ==  r @ W0_r + x @ W0_x   (exact, no concat copy).
    h = (jnp.dot(r_ref[...].astype(jnp.float32), pr[0][...],
                 preferred_element_type=jnp.float32)
         + jnp.dot(x_ref[...].astype(jnp.float32), pr[1][...],
                   preferred_element_type=jnp.float32)
         + pr[2][...])
    if num_layers > 1 or activate_final:
        h = leaky(h)

    # Layers 1 .. L-1.  Weights may be pre-cast bf16: only the running
    # activation is cast for the MXU; accumulation / bias / LeakyReLU stay f32.
    for l in range(1, num_layers):
        w = pr[2 * l + 1][...]
        b = pr[2 * l + 2][...]
        h = jnp.dot(h.astype(w.dtype), w, preferred_element_type=jnp.float32) + b
        if l < num_layers - 1 or activate_final:
            h = leaky(h)

    # Store only the TRUE output columns (lane width 1 here): no 128x padded
    # writeback and no post-kernel slice pass over a padded slab.
    o_ref[...] = h[:, : o_ref.shape[-1]].astype(o_ref.dtype)


# ----------------------------------------------------------------------------
# One-time parameter preparation (NOT in the per-call path).
# params: list of (W [in, out], b [out]) in f32, first layer input = dim_r+dim_x.
# ----------------------------------------------------------------------------
def prepare_v_network_params(params, dim_r, *, use_bf16=False,
                             activate_final=False):
    w_dtype = jnp.bfloat16 if use_bf16 else jnp.float32

    w0, b0 = params[0]
    d_in, d1 = w0.shape
    dim_x = d_in - dim_r
    d1_pad = _round_up(d1, LANE)

    # First-layer weights stay f32 (tiny K; keeps accuracy, avoids packed
    # small-K matmul shapes).  K dims are the true dim_r / dim_x (full-array
    # blocks), only the output dim is lane-padded.
    w0_r = jnp.zeros((dim_r, d1_pad), jnp.float32).at[:, :d1].set(
        jnp.asarray(w0, jnp.float32)[:dim_r])
    w0_x = jnp.zeros((dim_x, d1_pad), jnp.float32).at[:, :d1].set(
        jnp.asarray(w0, jnp.float32)[dim_r:])
    b0_p = jnp.zeros((1, d1_pad), jnp.float32).at[:, :d1].set(
        jnp.asarray(b0, jnp.float32).reshape(1, d1))

    padded = [w0_r, w0_x, b0_p]
    prev_pad = d1_pad
    for (w, b) in params[1:]:
        di, do = w.shape
        do_pad = _round_up(do, LANE)
        wp = jnp.zeros((prev_pad, do_pad), w_dtype).at[:di, :do].set(
            jnp.asarray(w, w_dtype))
        bp = jnp.zeros((1, do_pad), jnp.float32).at[:, :do].set(
            jnp.asarray(b, jnp.float32).reshape(1, do))
        padded += [wp, bp]
        prev_pad = do_pad

    return {
        "weights": tuple(padded),
        "num_layers": len(params),
        "dim_r": dim_r,
        "dim_x": dim_x,
        "out_dim": params[-1][0].shape[1],
        "activate_final": activate_final,
    }


# ----------------------------------------------------------------------------
# Per-call forward: a single pallas_call over a 1-D batch grid.
# ----------------------------------------------------------------------------
def v_network_forward(r, x, prepared, *, max_tile_b=512):
    ws = prepared["weights"]
    num_layers = prepared["num_layers"]
    out_dim = prepared["out_dim"]
    dim_r = prepared["dim_r"]
    dim_x = prepared["dim_x"]

    B = r.shape[0]
    assert r.shape[1] == dim_r and x.shape[1] == dim_x and x.shape[0] == B

    tile_b, b_pad = _choose_batch_tiling(B, max_tile_b)
    if b_pad != B:  # only when batch isn't already tile-aligned
        r = jnp.zeros((b_pad, dim_r), r.dtype).at[:B].set(r)
        x = jnp.zeros((b_pad, dim_x), x.dtype).at[:B].set(x)

    grid = (b_pad // tile_b,)

    in_specs = [
        pl.BlockSpec((tile_b, dim_r), lambda i: (i, 0),
                     memory_space=pltpu.MemorySpace.VMEM),
        pl.BlockSpec((tile_b, dim_x), lambda i: (i, 0),
                     memory_space=pltpu.MemorySpace.VMEM),
    ]
    for p in ws:
        # Constant index_map -> parameter blocks stay VMEM-resident across the grid.
        in_specs.append(pl.BlockSpec(p.shape, lambda i: (0, 0),
                                     memory_space=pltpu.MemorySpace.VMEM))
    out_specs = pl.BlockSpec((tile_b, out_dim), lambda i: (i, 0),
                             memory_space=pltpu.MemorySpace.VMEM)

    # Advisory cost estimate for XLA scheduling.
    d1_pad = ws[0].shape[1]
    flops = 2 * b_pad * (dim_r + dim_x) * d1_pad
    for l in range(1, num_layers):
        w = ws[2 * l + 1]
        flops += 2 * b_pad * w.shape[0] * w.shape[1]
    bytes_accessed = (r.size * r.dtype.itemsize + x.size * x.dtype.itemsize
                      + sum(p.size * p.dtype.itemsize for p in ws)
                      + b_pad * out_dim * 4)

    out = pl.pallas_call(
        functools.partial(_v_net_kernel,
                          num_layers=num_layers,
                          activate_final=prepared["activate_final"],
                          slope=LEAKY_SLOPE),
        out_shape=jax.ShapeDtypeStruct((b_pad, out_dim), jnp.float32),
        grid=grid,
        in_specs=in_specs,
        out_specs=out_specs,
        compiler_params=pltpu.CompilerParams(
            dimension_semantics=("parallel",),
            vmem_limit_bytes=32 * 1024 * 1024),
        cost_estimate=pl.CostEstimate(flops=flops, transcendentals=0,
                                      bytes_accessed=bytes_accessed),
    )(r, x, *ws)

    # torch.squeeze semantics: drops the batch dim too when B == 1.
    return jnp.squeeze(out[:B, :])


# ----------------------------------------------------------------------------
# Reference / init helpers (pure JAX, for validation only).
# ----------------------------------------------------------------------------
def init_mlp_params(key, input_dim, layer_widths):
    """Deterministic init mimicking torch.nn.Linear (uniform +-1/sqrt(fan_in))."""
    params = []
    prev = input_dim
    for width in layer_widths:
        key, kw, kb = jax.random.split(key, 3)
        bound = 1.0 / jnp.sqrt(prev)
        w = jax.random.uniform(kw, (prev, width), jnp.float32, -bound, bound)
        b = jax.random.uniform(kb, (width,), jnp.float32, -bound, bound)
        params.append((w, b))
        prev = width
    return params


def v_network_reference(r, x, params):
    h = jnp.concatenate((r, x), axis=1)
    n = len(params)
    for i, (w, b) in enumerate(params):
        h = h @ w + b.reshape(1, -1)
        if i != n - 1:
            h = jnp.where(h >= 0, h, LEAKY_SLOPE * h)
    return jnp.squeeze(h)


if __name__ == "__main__":
    key = jax.random.PRNGKey(0)
    batch = 8
    dimension_r = 4
    dimension_state = 12
    config = {"layers": [32, 32]}

    input_dim = dimension_r + dimension_state
    layer_widths = config["layers"] + [1]   # V_Network: MLP(..., layers + [1])

    key, kr, kx = jax.random.split(key, 3)
    r = jax.random.normal(kr, (batch, dimension_r), jnp.float32)
    x = jax.random.normal(kx, (batch, dimension_state), jnp.float32)
    params = init_mlp_params(key, input_dim, layer_widths)

    # One-time param preparation (padding / pre-casting hoisted out of the hot path).
    prep_f32 = prepare_v_network_params(params, dimension_r, use_bf16=False)
    prep_bf16 = prepare_v_network_params(params, dimension_r, use_bf16=True)

    ref = v_network_reference(r, x, params)

    # f32 path: exact match to reference.
    out = jax.block_until_ready(v_network_forward(r, x, prep_f32))
    assert out.shape == (batch,)
    assert jnp.allclose(out, ref, atol=1e-5, rtol=1e-5)

    # bf16 hidden-layer path (v6e/v7x fast path): relaxed tolerance.
    out_bf16 = jax.block_until_ready(v_network_forward(r, x, prep_bf16))
    assert jnp.allclose(out_bf16, ref, atol=5e-2, rtol=5e-2)

    # Non-aligned batch exercises batch padding + the >=2-tile (v7x) grid path.
    b2 = 13
    key, kr2, kx2 = jax.random.split(key, 3)
    r2 = jax.random.normal(kr2, (b2, dimension_r), jnp.float32)
    x2 = jax.random.normal(kx2, (b2, dimension_state), jnp.float32)
    out2 = jax.block_until_ready(v_network_forward(r2, x2, prep_f32))
    ref2 = v_network_reference(r2, x2, params)
    assert out2.shape == (b2,)
    assert jnp.allclose(out2, ref2, atol=1e-5, rtol=1e-5)

    print("KERNEL_OK")
</pallas_src>

<mosaic_0001>
module attributes {stable_mosaic.version = 11 : i64} {
  func.func @_v_net_kernel(%arg0: i32, %arg1: memref<8x4xf32, #tpu.memory_space<vmem>>, %arg2: memref<8x12xf32, #tpu.memory_space<vmem>>, %arg3: memref<4x128xf32, #tpu.memory_space<vmem>>, %arg4: memref<12x128xf32, #tpu.memory_space<vmem>>, %arg5: memref<1x128xf32, #tpu.memory_space<vmem>>, %arg6: memref<128x128xf32, #tpu.memory_space<vmem>>, %arg7: memref<1x128xf32, #tpu.memory_space<vmem>>, %arg8: memref<128x128xf32, #tpu.memory_space<vmem>>, %arg9: memref<1x128xf32, #tpu.memory_space<vmem>>, %arg10: memref<8x1xf32, #tpu.memory_space<vmem>>) attributes {dimension_semantics = [#tpu.dimension_semantics<parallel>], iteration_bounds = array<i64: 1>, scalar_prefetch = 0 : i64, scratch_operands = 0 : i64, tpu.core_type = #tpu.core_type<tc>, window_params = [{transform_indices = @transform_0, window_bounds = array<i64: 8, 4>}, {transform_indices = @transform_1, window_bounds = array<i64: 8, 12>}, {pipeline_mode = #tpu.pipeline_mode<synchronous>, transform_indices = @transform_2, window_bounds = array<i64: 4, 128>}, {pipeline_mode = #tpu.pipeline_mode<synchronous>, transform_indices = @transform_3, window_bounds = array<i64: 12, 128>}, {pipeline_mode = #tpu.pipeline_mode<synchronous>, transform_indices = @transform_4, window_bounds = array<i64: 1, 128>}, {pipeline_mode = #tpu.pipeline_mode<synchronous>, transform_indices = @transform_5, window_bounds = array<i64: 128, 128>}, {pipeline_mode = #tpu.pipeline_mode<synchronous>, transform_indices = @transform_6, window_bounds = array<i64: 1, 128>}, {pipeline_mode = #tpu.pipeline_mode<synchronous>, transform_indices = @transform_7, window_bounds = array<i64: 128, 128>}, {pipeline_mode = #tpu.pipeline_mode<synchronous>, transform_indices = @transform_8, window_bounds = array<i64: 1, 128>}, {transform_indices = @transform_9, window_bounds = array<i64: 8, 1>}]} {
    %c0 = arith.constant 0 : index
    %c0_0 = arith.constant 0 : index
    %0 = vector.load %arg1[%c0, %c0_0] : memref<8x4xf32, #tpu.memory_space<vmem>>, vector<8x4xf32>
    %c0_1 = arith.constant 0 : index
    %c0_2 = arith.constant 0 : index
    %1 = vector.load %arg3[%c0_1, %c0_2] : memref<4x128xf32, #tpu.memory_space<vmem>>, vector<4x128xf32>
    %cst = arith.constant dense<0.000000e+00> : vector<8x128xf32>
    %2 = tpu.matmul %0, %1, %cst {dimension_numbers = #tpu.dot_dimension_numbers<[1], [0], [0], [1], [0, 0, 1, 1], [], []>} : vector<8x4xf32>, vector<4x128xf32>, vector<8x128xf32> -> vector<8x128xf32>
    %c0_3 = arith.constant 0 : index
    %c0_4 = arith.constant 0 : index
    %3 = vector.load %arg2[%c0_3, %c0_4] : memref<8x12xf32, #tpu.memory_space<vmem>>, vector<8x12xf32>
    %c0_5 = arith.constant 0 : index
    %c0_6 = arith.constant 0 : index
    %4 = vector.load %arg4[%c0_5, %c0_6] : memref<12x128xf32, #tpu.memory_space<vmem>>, vector<12x128xf32>
    %cst_7 = arith.constant dense<0.000000e+00> : vector<8x128xf32>
    %5 = tpu.matmul %3, %4, %cst_7 {dimension_numbers = #tpu.dot_dimension_numbers<[1], [0], [0], [1], [0, 0, 1, 1], [], []>} : vector<8x12xf32>, vector<12x128xf32>, vector<8x128xf32> -> vector<8x128xf32>
    %6 = arith.addf %2, %5 : vector<8x128xf32>
    %c0_8 = arith.constant 0 : index
    %c0_9 = arith.constant 0 : index
    %7 = vector.load %arg5[%c0_8, %c0_9] : memref<1x128xf32, #tpu.memory_space<vmem>>, vector<1x128xf32>
    %8 = vector.broadcast %7 : vector<1x128xf32> to vector<8x128xf32>
    %9 = arith.addf %6, %8 : vector<8x128xf32>
    %cst_10 = arith.constant 0.000000e+00 : f32
    %10 = vector.broadcast %cst_10 : f32 to vector<8x128xf32>
    %11 = arith.cmpf oge, %9, %10 : vector<8x128xf32>
    %cst_11 = arith.constant 0.00999999977 : f32
    %12 = vector.broadcast %cst_11 : f32 to vector<8x128xf32>
    %13 = arith.mulf %12, %9 : vector<8x128xf32>
    %14 = arith.select %11, %9, %13 : vector<8x128xi1>, vector<8x128xf32>
    %c0_12 = arith.constant 0 : index
    %c0_13 = arith.constant 0 : index
    %15 = vector.load %arg6[%c0_12, %c0_13] : memref<128x128xf32, #tpu.memory_space<vmem>>, vector<128x128xf32>
    %c0_14 = arith.constant 0 : index
    %c0_15 = arith.constant 0 : index
    %16 = vector.load %arg7[%c0_14, %c0_15] : memref<1x128xf32, #tpu.memory_space<vmem>>, vector<1x128xf32>
    %cst_16 = arith.constant dense<0.000000e+00> : vector<8x128xf32>
    %17 = tpu.matmul %14, %15, %cst_16 {dimension_numbers = #tpu.dot_dimension_numbers<[1], [0], [0], [1], [0, 0, 1, 1], [], []>} : vector<8x128xf32>, vector<128x128xf32>, vector<8x128xf32> -> vector<8x128xf32>
    %18 = vector.broadcast %16 : vector<1x128xf32> to vector<8x128xf32>
    %19 = arith.addf %17, %18 : vector<8x128xf32>
    %cst_17 = arith.constant 0.000000e+00 : f32
    %20 = vector.broadcast %cst_17 : f32 to vector<8x128xf32>
    %21 = arith.cmpf oge, %19, %20 : vector<8x128xf32>
    %cst_18 = arith.constant 0.00999999977 : f32
    %22 = vector.broadcast %cst_18 : f32 to vector<8x128xf32>
    %23 = arith.mulf %22, %19 : vector<8x128xf32>
    %24 = arith.select %21, %19, %23 : vector<8x128xi1>, vector<8x128xf32>
    %c0_19 = arith.constant 0 : index
    %c0_20 = arith.constant 0 : index
    %25 = vector.load %arg8[%c0_19, %c0_20] : memref<128x128xf32, #tpu.memory_space<vmem>>, vector<128x128xf32>
    %c0_21 = arith.constant 0 : index
    %c0_22 = arith.constant 0 : index
    %26 = vector.load %arg9[%c0_21, %c0_22] : memref<1x128xf32, #tpu.memory_space<vmem>>, vector<1x128xf32>
    %cst_23 = arith.constant dense<0.000000e+00> : vector<8x128xf32>
    %27 = tpu.matmul %24, %25, %cst_23 {dimension_numbers = #tpu.dot_dimension_numbers<[1], [0], [0], [1], [0, 0, 1, 1], [], []>} : vector<8x128xf32>, vector<128x128xf32>, vector<8x128xf32> -> vector<8x128xf32>
    %28 = vector.broadcast %26 : vector<1x128xf32> to vector<8x128xf32>
    %29 = arith.addf %27, %28 : vector<8x128xf32>
    %30 = vector.extract_strided_slice %29 {offsets = [0, 0], sizes = [8, 1], strides = [1, 1]} : vector<8x128xf32> to vector<8x1xf32>
    %c0_24 = arith.constant 0 : index
    %c0_25 = arith.constant 0 : index
    %31 = vector.load %arg10[%c0_24, %c0_25] : memref<8x1xf32, #tpu.memory_space<vmem>>, vector<8x1xf32>
    tpu.vector_store %arg10[%c0_24, %c0_25], %30 {strides = array<i32>} : memref<8x1xf32, #tpu.memory_space<vmem>>, vector<8x1xf32>,
    return
  }
  func.func @transform_0(%arg0: i32) -> (i32, i32) {
    %c0_i32 = arith.constant 0 : i32
    %c0_i32_0 = arith.constant 0 : i32
    return %arg0, %c0_i32 : i32, i32
  }
  func.func @transform_1(%arg0: i32) -> (i32, i32) {
    %c0_i32 = arith.constant 0 : i32
    %c0_i32_0 = arith.constant 0 : i32
    return %arg0, %c0_i32 : i32, i32
  }
  func.func @transform_2(%arg0: i32) -> (i32, i32) {
    %c0_i32 = arith.constant 0 : i32
    %c0_i32_0 = arith.constant 0 : i32
    %c0_i32_1 = arith.constant 0 : i32
    return %c0_i32, %c0_i32_0 : i32, i32
  }
  func.func @transform_3(%arg0: i32) -> (i32, i32) {
    %c0_i32 = arith.constant 0 : i32
    %c0_i32_0 = arith.constant 0 : i32
    %c0_i32_1 = arith.constant 0 : i32
    return %c0_i32, %c0_i32_0 : i32, i32
  }
  func.func @transform_4(%arg0: i32) -> (i32, i32) {
    %c0_i32 = arith.constant 0 : i32
    %c0_i32_0 = arith.constant 0 : i32
    %c0_i32_1 = arith.constant 0 : i32
    return %c0_i32, %c0_i32_0 : i32, i32
  }
  func.func @transform_5(%arg0: i32) -> (i32, i32) {
    %c0_i32 = arith.constant 0 : i32
    %c0_i32_0 = arith.constant 0 : i32
    %c0_i32_1 = arith.constant 0 : i32
    return %c0_i32, %c0_i32_0 : i32, i32
  }
  func.func @transform_6(%arg0: i32) -> (i32, i32) {
    %c0_i32 = arith.constant 0 : i32
    %c0_i32_0 = arith.constant 0 : i32
    %c0_i32_1 = arith.constant 0 : i32
    return %c0_i32, %c0_i32_0 : i32, i32
  }
  func.func @transform_7(%arg0: i32) -> (i32, i32) {
    %c0_i32 = arith.constant 0 : i32
    %c0_i32_0 = arith.constant 0 : i32
    %c0_i32_1 = arith.constant 0 : i32
    return %c0_i32, %c0_i32_0 : i32, i32
  }
  func.func @transform_8(%arg0: i32) -> (i32, i32) {
    %c0_i32 = arith.constant 0 : i32
    %c0_i32_0 = arith.constant 0 : i32
    %c0_i32_1 = arith.constant 0 : i32
    return %c0_i32, %c0_i32_0 : i32, i32
  }
  func.func @transform_9(%arg0: i32) -> (i32, i32) {
    %c0_i32 = arith.constant 0 : i32
    %c0_i32_0 = arith.constant 0 : i32
    return %arg0, %c0_i32 : i32, i32
  }
}

</mosaic_0001>

<llo_original>
// kernel: tpu_custom_call.1
$region0: #{tpu_custom_call.1}
  #allocation0 [shape = 'u32[]', space=smem, size = 0x4, offset = 0x4, fixed_abs, tag = 'smem constant byte address 0x4 - core index']
  #allocation1 [shape = 'u32[72,128]{1,0:T(1,128)}', space=vmem, size = 0x9000, scoped, tag = 'internal scratch']
  %s0 = inlined_call_operand.vmem [shape: f32[8,4], index: 0, kind: input, shape index: {}]
  %s1 = inlined_call_operand.vmem [shape: f32[8,12], index: 1, kind: input, shape index: {}]
  %s2 = inlined_call_operand.vmem [shape: f32[4,128], index: 2, kind: input, shape index: {}]
  %s3 = inlined_call_operand.hbm [shape: f32[12,128], index: 3, kind: input, shape index: {}]
  %s4 = inlined_call_operand.vmem [shape: f32[1,128], index: 4, kind: input, shape index: {}]
  %s5 = inlined_call_operand.hbm [shape: f32[128,128], index: 5, kind: input, shape index: {}]
  %s6 = inlined_call_operand.vmem [shape: f32[1,128], index: 6, kind: input, shape index: {}]
  %s7 = inlined_call_operand.hbm [shape: f32[128,128], index: 7, kind: input, shape index: {}]
  %s8 = inlined_call_operand.vmem [shape: f32[1,128], index: 8, kind: input, shape index: {}]
  %s9 = inlined_call_operand.vmem [shape: f32[8,1], index: 9, kind: output, shape index: {}]
  %s10 = sld [smem:[#allocation0]]
  $region58: #{tpu_custom_call.1} parent=0
    _
  %s12 = ssub.s32 1, %s10
  %s13 = scalar_select 0, %s12, %s10
  $region1: #{tpu_custom_call.1} parent=0
    #allocation2 [shape = 'u8[8192]{0}', space=vmem, size = 0x2000, scoped, tag = 'input window, operand 3, single buffered']
    #allocation3 [shape = 's32[1]{0}', space=sflag, size = 0x4, scoped, tag = 'scoped memory for tpu_custom_call.1']
    #allocation4 [shape = 'u8[65536]{0}', space=vmem, size = 0x10000, scoped, tag = 'input window, operand 5, single buffered']
    #allocation5 [shape = 's32[1]{0}', space=sflag, size = 0x4, scoped, tag = 'scoped memory for tpu_custom_call.1']
    #allocation6 [shape = 'u8[65536]{0}', space=vmem, size = 0x10000, scoped, tag = 'input window, operand 7, single buffered']
    %14 = vsyncpa [#allocation3], 0
    %15 = vsyncpa [#allocation5], 0
    // Predicated region
    $region2: #{tpu_custom_call.1} parent=1 // pred_check
      _
    $region3: #{tpu_custom_call.1} parent=1 // pred_check_branch
      %17 = sbr.rel (0) target = $region5
    $region4: #{tpu_custom_call.1} parent=1 // pred_region
      _
    $region5: #{tpu_custom_call.1} parent=1 // pred_fallthru
      _
    // Predicated region
    $region6: #{tpu_custom_call.1} parent=1 // pred_check
      _
    $region7: #{tpu_custom_call.1} parent=1 // pred_check_branch
      %19 = sbr.rel (0) target = $region9
    $region8: #{tpu_custom_call.1} parent=1 // pred_region
      _
    $region9: #{tpu_custom_call.1} parent=1 // pred_fallthru
      _
    // Predicated region
    $region10: #{tpu_custom_call.1} parent=1 // pred_check
      _
    $region11: #{tpu_custom_call.1} parent=1 // pred_check_branch
      %21 = sbr.rel (0) target = $region13
    $region12: #{tpu_custom_call.1} parent=1 // pred_region
      _
    $region13: #{tpu_custom_call.1} parent=1 // pred_fallthru
      _
    // Predicated region
    $region14: #{tpu_custom_call.1} parent=1 // pred_check
      _
    $region15: #{tpu_custom_call.1} parent=1 // pred_check_branch
      %23 = sbr.rel (0) target = $region17
    $region16: #{tpu_custom_call.1} parent=1 // pred_region
      %25 = vsyncadd [#allocation3], 0
      %s26 = sshll.u32 %s3, 4
      %s27 = int_to_ptr.hbm [resolvable:$true] %s26
      %s28 = sshll.u32 [#allocation2], 4
      %s29 = int_to_ptr.vmem [resolvable:$true] %s28
      %34 = dma.hbm_to_vmem [thread:$0]  %s27, 256, %s29, [#allocation3], 128, 128, 8
    $region17: #{tpu_custom_call.1} parent=1 // pred_fallthru
      _
    // Predicated region
    $region18: #{tpu_custom_call.1} parent=1 // pred_check
      _
    $region19: #{tpu_custom_call.1} parent=1 // pred_check_branch
      %36 = sbr.rel (0) target = $region21
    $region20: #{tpu_custom_call.1} parent=1 // pred_region
      _
    $region21: #{tpu_custom_call.1} parent=1 // pred_fallthru
      _
    // Predicated region
    $region22: #{tpu_custom_call.1} parent=1 // pred_check
      _
    $region23: #{tpu_custom_call.1} parent=1 // pred_check_branch
      %38 = sbr.rel (0) target = $region25
    $region24: #{tpu_custom_call.1} parent=1 // pred_region
      %40 = vsyncadd [#allocation5], 0
      %s41 = sshll.u32 %s5, 4
      %s42 = int_to_ptr.hbm [resolvable:$true] %s41
      %s43 = sshll.u32 [#allocation4], 4
      %s44 = int_to_ptr.vmem [resolvable:$true] %s43
      %49 = dma.hbm_to_vmem [thread:$0]  %s42, 2048, %s44, [#allocation5], 128, 128, 8
    $region25: #{tpu_custom_call.1} parent=1 // pred_fallthru
      _
    // Predicated region
    $region26: #{tpu_custom_call.1} parent=1 // pred_check
      _
    $region27: #{tpu_custom_call.1} parent=1 // pred_check_branch
      %51 = sbr.rel (0) target = $region29
    $region28: #{tpu_custom_call.1} parent=1 // pred_region
      _
    $region29: #{tpu_custom_call.1} parent=1 // pred_fallthru
      _
    // Predicated region
    $region30: #{tpu_custom_call.1} parent=1 // pred_check
      _
    $region31: #{tpu_custom_call.1} parent=1 // pred_check_branch
      %53 = sbr.rel (0) target = $region33
    $region32: #{tpu_custom_call.1} parent=1 // pred_region
      %55 = vsyncadd [#allocation5], 0
      %s56 = sshll.u32 %s7, 4
      %s57 = int_to_ptr.hbm [resolvable:$true] %s56
      %s58 = sshll.u32 [#allocation6], 4
      %s59 = int_to_ptr.vmem [resolvable:$true] %s58
      %64 = dma.hbm_to_vmem [thread:$0]  %s57, 2048, %s59, [#allocation5], 128, 128, 8
    $region33: #{tpu_custom_call.1} parent=1 // pred_fallthru
      _
    // Predicated region
    $region34: #{tpu_custom_call.1} parent=1 // pred_check
      _
    $region35: #{tpu_custom_call.1} parent=1 // pred_check_branch
      %66 = sbr.rel (0) target = $region37
    $region36: #{tpu_custom_call.1} parent=1 // pred_region
      _
    $region37: #{tpu_custom_call.1} parent=1 // pred_fallthru
      _
    // Predicated region
    $region38: #{tpu_custom_call.1} parent=1 // pred_check
      _
    $region39: #{tpu_custom_call.1} parent=1 // pred_check_branch
      %68 = sbr.rel (0) target = $region41
    $region40: #{tpu_custom_call.1} parent=1 // pred_region
      %70 = dma.done [#allocation3], 256
    $region41: #{tpu_custom_call.1} parent=1 // pred_fallthru
      _
    // Predicated region
    $region42: #{tpu_custom_call.1} parent=1 // pred_check
      _
    $region43: #{tpu_custom_call.1} parent=1 // pred_check_branch
      %72 = sbr.rel (0) target = $region45
    $region44: #{tpu_custom_call.1} parent=1 // pred_region
      %74 = dma.done [#allocation5], 2048
    $region45: #{tpu_custom_call.1} parent=1 // pred_fallthru
      _
    // Predicated region
    $region46: #{tpu_custom_call.1} parent=1 // pred_check
      _
    $region47: #{tpu_custom_call.1} parent=1 // pred_check_branch
      %76 = sbr.rel (0) target = $region49
    $region48: #{tpu_custom_call.1} parent=1 // pred_region
      %78 = dma.done [#allocation5], 2048
    $region49: #{tpu_custom_call.1} parent=1 // pred_fallthru
      _
    %v79 = vld [vmem:[%s0] sm:$0xff]
    %v80 = vld [vmem:[%s2] sm:$0xf]
    %v81 = vld [vmem:[%s1] sm:$0xff]
    %v82 = vld [vmem:[#allocation2] sm:$0xff]
    %v83 = vld [vmem:[#allocation2 + $0x8] sm:$0xf]
    %vm84 = vcmask 97280
    %v86 = vsel %vm84, %v81, 0
    %vm88 = vcmask 1043456
    %v90 = vsel %vm88, %v83, 0
    %92 = vmatpush.msra.mxu0 0.0
    %93 = vmatpush.msra.mxu0 0.0
    %94 = vmatpush.msra.mxu0 0.0
    %95 = vmatpush.msra.mxu0 0.0
    %96 = vmatpush.msra.mxu0 0.0
    %97 = vmatpush.msra.mxu0 0.0
    %98 = vmatpush.msra.mxu0 0.0
    %99 = vmatpush.msra.mxu0 0.0
    %100 = vmatpush.msra.mxu0 0.0
    %101 = vmatpush.msra.mxu0 0.0
    %102 = vmatpush.msra.mxu0 0.0
    %103 = vmatpush.msra.mxu0 0.0
    %104 = vmatpush.msra.mxu0 0.0
    %105 = vmatpush.msra.mxu0 0.0
    %106 = vmatpush.msra.mxu0 %v90
    %107 = vmatpush.msra.mxu0 %v82
    %108 = vmatmul.f32.gmra.mxu0 %v86
    %v109 = vpop.f32.mrf.mxu0
    %v110 = vadd.f32 0.0, %v109
    %111 = vdwg.mxu0
    %vm112 = vcmask 31744
    %v114 = vsel %vm112, %v79, 0
    %v117 = vsel %vm88, %v80, 0
    %119 = vmatpush.msra.mxu0 0.0
    %120 = vmatpush.msra.mxu0 0.0
    %121 = vmatpush.msra.mxu0 0.0
    %122 = vmatpush.msra.mxu0 0.0
    %123 = vmatpush.msra.mxu0 0.0
    %124 = vmatpush.msra.mxu0 0.0
    %125 = vmatpush.msra.mxu0 0.0
    %126 = vmatpush.msra.mxu0 0.0
    %127 = vmatpush.msra.mxu0 0.0
    %128 = vmatpush.msra.mxu0 0.0
    %129 = vmatpush.msra.mxu0 0.0
    %130 = vmatpush.msra.mxu0 0.0
    %131 = vmatpush.msra.mxu0 0.0
    %132 = vmatpush.msra.mxu0 0.0
    %133 = vmatpush.msra.mxu0 0.0
    %134 = vmatpush.msra.mxu0 %v117
    %135 = vmatmul.f32.gmra.mxu0 %v114
    %v136 = vpop.f32.mrf.mxu0
    %v137 = vadd.f32 %v110, %v136
    %138 = vdwg.mxu0
    %v139 = vld [vmem:[%s4] sm:$0x1]
    %v141 = vperm.slane %v139, 0
    %v143 = vadd.f32 %v137, %v141
    %vm144 = vcmp.ge.f32.partialorder %v143, 0.0
    %v145 = vmul.f32 %v143, 0.01
    %v146 = vsel %vm144, %v143, %v145
    %v147 = vld [vmem:[#allocation4] sm:$0xff]
    %v148 = vld [vmem:[#allocation4 + $0x8] sm:$0xff]
    %v149 = vld [vmem:[#allocation4 + $0x10] sm:$0xff]
    %v150 = vld [vmem:[#allocation4 + $0x18] sm:$0xff]
    %v151 = vld [vmem:[#allocation4 + $0x20] sm:$0xff]
    %v152 = vld [vmem:[#allocation4 + $0x28] sm:$0xff]
    %v153 = vld [vmem:[#allocation4 + $0x30] sm:$0xff]
    %v154 = vld [vmem:[#allocation4 + $0x38] sm:$0xff]
    %v155 = vld [vmem:[#allocation4 + $0x40] sm:$0xff]
    %v156 = vld [vmem:[#allocation4 + $0x48] sm:$0xff]
    %v157 = vld [vmem:[#allocation4 + $0x50] sm:$0xff]
    %v158 = vld [vmem:[#allocation4 + $0x58] sm:$0xff]
    %v159 = vld [vmem:[#allocation4 + $0x60] sm:$0xff]
    %v160 = vld [vmem:[#allocation4 + $0x68] sm:$0xff]
    %v161 = vld [vmem:[#allocation4 + $0x70] sm:$0xff]
    %v162 = vld [vmem:[#allocation4 + $0x78] sm:$0xff]
    %v163 = vld [vmem:[%s6] sm:$0x1]
    %v165 = vperm.slane %v163, 0
    %167 = vmatpush.msra.mxu0 %v162
    %168 = vmatpush.msra.mxu0 %v161
    %169 = vmatpush.msra.mxu0 %v160
    %170 = vmatpush.msra.mxu0 %v159
    %171 = vmatpush.msra.mxu0 %v158
    %172 = vmatpush.msra.mxu0 %v157
    %173 = vmatpush.msra.mxu0 %v156
    %174 = vmatpush.msra.mxu0 %v155
    %175 = vmatpush.msra.mxu0 %v154
    %176 = vmatpush.msra.mxu0 %v153
    %177 = vmatpush.msra.mxu0 %v152
    %178 = vmatpush.msra.mxu0 %v151
    %179 = vmatpush.msra.mxu0 %v150
    %180 = vmatpush.msra.mxu0 %v149
    %181 = vmatpush.msra.mxu0 %v148
    %182 = vmatpush.msra.mxu0 %v147
    %183 = vmatmul.f32.gmra.mxu0 %v146
    %v184 = vpop.f32.mrf.mxu0
    %v185 = vadd.f32 %v165, %v184
    %186 = vdwg.mxu0
    %vm187 = vcmp.ge.f32.partialorder %v185, 0.0
    %v188 = vmul.f32 %v185, 0.01
    %v189 = vsel %vm187, %v185, %v188
    %v190 = vld [vmem:[#allocation6] sm:$0xff]
    %v191 = vld [vmem:[#allocation6 + $0x8] sm:$0xff]
    %v192 = vld [vmem:[#allocation6 + $0x10] sm:$0xff]
    %v193 = vld [vmem:[#allocation6 + $0x18] sm:$0xff]
    %v194 = vld [vmem:[#allocation6 + $0x20] sm:$0xff]
    %v195 = vld [vmem:[#allocation6 + $0x28] sm:$0xff]
    %v196 = vld [vmem:[#allocation6 + $0x30] sm:$0xff]
    %v197 = vld [vmem:[#allocation6 + $0x38] sm:$0xff]
    %v198 = vld [vmem:[#allocation6 + $0x40] sm:$0xff]
    %v199 = vld [vmem:[#allocation6 + $0x48] sm:$0xff]
    %v200 = vld [vmem:[#allocation6 + $0x50] sm:$0xff]
    %v201 = vld [vmem:[#allocation6 + $0x58] sm:$0xff]
    %v202 = vld [vmem:[#allocation6 + $0x60] sm:$0xff]
    %v203 = vld [vmem:[#allocation6 + $0x68] sm:$0xff]
    %v204 = vld [vmem:[#allocation6 + $0x70] sm:$0xff]
    %v205 = vld [vmem:[#allocation6 + $0x78] sm:$0xff]
    %v206 = vld [vmem:[%s8] sm:$0x1]
    %v208 = vperm.slane %v206, 0
    %210 = vmatpush.msra.mxu0 %v205
    %211 = vmatpush.msra.mxu0 %v204
    %212 = vmatpush.msra.mxu0 %v203
    %213 = vmatpush.msra.mxu0 %v202
    %214 = vmatpush.msra.mxu0 %v201
    %215 = vmatpush.msra.mxu0 %v200
    %216 = vmatpush.msra.mxu0 %v199
    %217 = vmatpush.msra.mxu0 %v198
    %218 = vmatpush.msra.mxu0 %v197
    %219 = vmatpush.msra.mxu0 %v196
    %220 = vmatpush.msra.mxu0 %v195
    %221 = vmatpush.msra.mxu0 %v194
    %222 = vmatpush.msra.mxu0 %v193
    %223 = vmatpush.msra.mxu0 %v192
    %224 = vmatpush.msra.mxu0 %v191
    %225 = vmatpush.msra.mxu0 %v190
    %226 = vmatmul.f32.gmra.mxu0 %v189
    %v227 = vpop.f32.mrf.mxu0
    %v228 = vadd.f32 %v208, %v227
    %229 = vdwg.mxu0
    %vm230 = vcmask 7168
    %231 = vst.msk [vmem:[%s9] sm:$0xff] %vm230, %v228
    // Predicated region
    $region50: #{tpu_custom_call.1} parent=1 // pred_check
      _
    $region51: #{tpu_custom_call.1} parent=1 // pred_check_branch
      %233 = sbr.rel (0) target = $region53
    $region52: #{tpu_custom_call.1} parent=1 // pred_region
      _
    $region53: #{tpu_custom_call.1} parent=1 // pred_fallthru
      _
    // Predicated region
    $region54: #{tpu_custom_call.1} parent=1 // pred_check
      _
    $region55: #{tpu_custom_call.1} parent=1 // pred_check_branch
      %235 = sbr.rel (0) target = $region57
    $region56: #{tpu_custom_call.1} parent=1 // pred_region
      _
    $region57: #{tpu_custom_call.1} parent=1 // pred_fallthru
      _
    %236 = vsyncpa [#allocation3], 1
    %237 = vsyncpa [#allocation5], 1

</llo_original>
